<compile_context>
chip_gen: v7x
topology: tpu7x:2x2x1
jax: 0.10.0
libtpu: 0.0.40
codegen_flags: <defaults>
</compile_context>

<pallas_src>
import jax
import jax.numpy as jnp
import numpy as np
from jax.experimental import pallas as pl
from jax.experimental.pallas import tpu as pltpu

# ----- EDM preconditioning constants (module __init__ defaults) -----
SIGMA_DATA = 0.5
SIGMA_MIN = 0.002
SIGMA_MAX = 80.0
RHO = 7.0

# ----- synthetic DiT-lite config -----
PATCH = 4
HIDDEN = 32        # transformer hidden dim D
MLP_HIDDEN = 64    # MLP hidden dim
NUM_CLASSES = 10
LANE = 128         # padded lane width for every feature axis
MAX_TM = 256       # row tile (tokens per grid step) for large B*N


# =====================================================================
# Pallas kernel: one TM-row tile of the flattened (BN, 128) token slab.
# =====================================================================
def _edm_dit_kernel(x_ref,                 # VMEM (TM, 128) f32  raw padded tokens
                    cin_ref,               # VMEM (TM, 1)   f32  per-row c_in
                    cskip_ref,             # VMEM (TM, 1)   f32  per-row c_skip
                    cout_ref,              # VMEM (TM, 1)   f32  per-row c_out
                    cond_ref,              # VMEM (TM, 128) f32  SiLU(cond) + bpe, row-replicated
                    wpe_ref,               # (128,128) bf16
                    w1_ref, b1_ref,        # (128,128) bf16, (1,128) f32
                    w2_ref, b2_ref,        # (128,128) bf16, (1,128) f32
                    wout_ref, bout_ref,    # (128,128) bf16, (1,128) f32
                    out_ref):              # VMEM (TM, 128) f32
    x = x_ref[...]                                            # (TM, 128) f32

    # Patch embed: dot(c_in*x, Wpe) == c_in * dot(x, Wpe)  (c_in is per-row),
    # applied post-accumulation in f32.  bpe is pre-folded into cond_ref.
    tok = cin_ref[...] * jnp.dot(x.astype(jnp.bfloat16), wpe_ref[...],
                                 preferred_element_type=jnp.float32)

    # Conditioning (already includes bpe), then the MLP + output projection.
    h = tok + cond_ref[...]
    h = jnp.dot(h.astype(jnp.bfloat16), w1_ref[...],
                preferred_element_type=jnp.float32) + b1_ref[...]
    h = jax.nn.gelu(h)
    h = jnp.dot(h.astype(jnp.bfloat16), w2_ref[...],
                preferred_element_type=jnp.float32) + b2_ref[...]
    model_out = jnp.dot(h.astype(jnp.bfloat16), wout_ref[...],
                        preferred_element_type=jnp.float32) + bout_ref[...]

    # EDM output combination (skip path in full f32).
    out_ref[...] = cskip_ref[...] * x + cout_ref[...] * model_out


# =====================================================================
# JAX glue: patchify / unpatchify / timestep features / params
# =====================================================================
def _patchify(x, p):
    B, C, H, W = x.shape
    hp, wp = H // p, W // p
    x = x.reshape(B, C, hp, p, wp, p)
    x = x.transpose(0, 2, 4, 3, 5, 1)            # (B, hp, wp, p, p, C)
    return x.reshape(B, hp * wp, p * p * C)


def _unpatchify(tok, p, C, H, W):
    B = tok.shape[0]
    hp, wp = H // p, W // p
    x = tok.reshape(B, hp, wp, p, p, C)
    x = x.transpose(0, 5, 1, 3, 2, 4)            # (B, C, hp, p, wp, p)
    return x.reshape(B, C, H, W)


def _timestep_features(c_noise, dim):
    half = dim // 2
    freqs = jnp.exp(-jnp.log(10000.0) * jnp.arange(half, dtype=jnp.float32) / half)
    args = c_noise[:, None] * freqs[None, :]
    return jnp.concatenate([jnp.cos(args), jnp.sin(args)], axis=-1)   # (B, dim)


def init_params(key, C):
    pd = PATCH * PATCH * C
    ks = jax.random.split(key, 6)

    def w(k, shape):
        return 0.02 * jax.random.normal(k, shape, jnp.float32)

    return {
        "wpe": w(ks[0], (pd, HIDDEN)), "bpe": jnp.zeros((1, HIDDEN), jnp.float32),
        "wt": w(ks[1], (HIDDEN, HIDDEN)), "bt": jnp.zeros((1, HIDDEN), jnp.float32),
        "w1": w(ks[2], (HIDDEN, MLP_HIDDEN)), "b1": jnp.zeros((1, MLP_HIDDEN), jnp.float32),
        "w2": w(ks[3], (MLP_HIDDEN, HIDDEN)), "b2": jnp.zeros((1, HIDDEN), jnp.float32),
        "wout": w(ks[4], (HIDDEN, pd)), "bout": jnp.zeros((1, pd), jnp.float32),
        "class_emb": w(ks[5], (NUM_CLASSES, HIDDEN)),
    }


def _pad2(a, rows, cols):
    return jnp.pad(a, ((0, rows - a.shape[0]), (0, cols - a.shape[1])))


# =====================================================================
# Forward pass (mirrors EDMDiTPrecondWrapper.forward)
# =====================================================================
@jax.jit
def edm_dit_precond_forward(params, X, sigma, cond=None):
    B, C, H, W = X.shape
    if cond is None:
        cond = jnp.zeros((B,), dtype=jnp.int32)

    # TODO(synk): PyTorch mutates `sigma` in place (sigma[sigma==0]=sigma_min);
    # JAX is functional, so the substitution is only applied internally.
    sigma = jnp.where(sigma == 0.0, SIGMA_MIN, sigma).astype(jnp.float32)
    sd2 = SIGMA_DATA * SIGMA_DATA
    denom = sigma * sigma + sd2
    c_skip = sd2 / denom                                  # (B,)
    c_out = sigma * SIGMA_DATA / jnp.sqrt(denom)          # (B,)
    c_in = 1.0 / jnp.sqrt(denom)                          # (B,)
    c_noise = jnp.log(sigma) / 4.0

    # Hoisted conditioning branch: SiLU(t_freq @ Wt + bt + class_emb[y]),
    # then fold the patch-embed bias in (tok + bpe + cond == tok + (cond+bpe)).
    t_freq = _timestep_features(c_noise, HIDDEN)                              # (B, D)
    cond_v = jnp.dot(t_freq, params["wt"]) + params["bt"] + params["class_emb"][cond]
    cond_v = cond_v * jax.nn.sigmoid(cond_v)                                  # (B, D)
    cond_v = cond_v + params["bpe"]                                           # fold bpe

    # Patchify + flatten the whole batch into one lane-dense slab.
    x_tok = _patchify(X.astype(jnp.float32), PATCH)       # (B, N, Pd)
    N, Pd = x_tok.shape[1], x_tok.shape[2]
    BN = B * N

    # Row tile: big tiles for large BN (pipelined grid), one tile otherwise.
    if BN >= MAX_TM:
        TM = MAX_TM
    else:
        TM = ((BN + 7) // 8) * 8
    BN_pad = ((BN + TM - 1) // TM) * TM
    grid = (BN_pad // TM,)

    x_flat = _pad2(x_tok.reshape(BN, Pd), BN_pad, LANE)                   # f32 (BNp,128)
    cond_rows = _pad2(jnp.repeat(cond_v, N, axis=0), BN_pad, LANE)        # f32 (BNp,128)
    cin_rows = _pad2(jnp.repeat(c_in, N).reshape(BN, 1), BN_pad, 1)
    cskip_rows = _pad2(jnp.repeat(c_skip, N).reshape(BN, 1), BN_pad, 1)
    cout_rows = _pad2(jnp.repeat(c_out, N).reshape(BN, 1), BN_pad, 1)

    # Lane-pad weights to 128 and cast to bf16 (biases stay f32, added post-acc).
    bf = jnp.bfloat16
    wpe = _pad2(params["wpe"], LANE, LANE).astype(bf)
    w1 = _pad2(params["w1"], LANE, LANE).astype(bf)
    b1 = _pad2(params["b1"], 1, LANE)
    w2 = _pad2(params["w2"], LANE, LANE).astype(bf)
    b2 = _pad2(params["b2"], 1, LANE)
    wout = _pad2(params["wout"], LANE, LANE).astype(bf)
    bout = _pad2(params["bout"], 1, LANE)

    row_spec = pl.BlockSpec((TM, LANE), lambda i: (i, 0))
    coef_spec = pl.BlockSpec((TM, 1), lambda i: (i, 0))
    w_spec = pl.BlockSpec((LANE, LANE), lambda i: (0, 0))    # resident across steps
    b_spec = pl.BlockSpec((1, LANE), lambda i: (0, 0))

    out_flat = pl.pallas_call(
        _edm_dit_kernel,
        out_shape=jax.ShapeDtypeStruct((BN_pad, LANE), jnp.float32),
        grid=grid,
        in_specs=[row_spec, coef_spec, coef_spec, coef_spec, row_spec,
                  w_spec, w_spec, b_spec, w_spec, b_spec, w_spec, b_spec],
        out_specs=row_spec,
        compiler_params=pltpu.CompilerParams(
            dimension_semantics=("parallel",)),
    )(x_flat, cin_rows, cskip_rows, cout_rows, cond_rows,
      wpe, w1, b1, w2, b2, wout, bout)

    out_tok = out_flat[:BN, :Pd].reshape(B, N, Pd)
    return _unpatchify(out_tok, PATCH, C, H, W)


# =====================================================================
# Pure-JAX reference (same math) for verification
# =====================================================================
def _reference_forward(params, X, sigma, cond):
    B, C, H, W = X.shape
    sigma = jnp.where(sigma == 0.0, SIGMA_MIN, sigma).astype(jnp.float32)
    sv = sigma.reshape(B, 1, 1, 1)
    sd2 = SIGMA_DATA ** 2
    c_skip = sd2 / (sv ** 2 + sd2)
    c_out = sv * SIGMA_DATA / jnp.sqrt(sv ** 2 + sd2)
    c_in = 1.0 / jnp.sqrt(sd2 + sv ** 2)
    c_noise = jnp.log(sigma) / 4.0

    hp = jax.lax.Precision.HIGHEST
    x_tok = _patchify(c_in * X, PATCH)
    tok = jnp.dot(x_tok, params["wpe"], precision=hp) + params["bpe"]
    t_freq = _timestep_features(c_noise, HIDDEN)
    condv = jnp.dot(t_freq, params["wt"], precision=hp) + params["bt"] + params["class_emb"][cond]
    condv = condv * jax.nn.sigmoid(condv)
    h = tok + condv[:, None, :]
    h = jax.nn.gelu(jnp.dot(h, params["w1"], precision=hp) + params["b1"])
    h = jnp.dot(h, params["w2"], precision=hp) + params["b2"]
    out_tok = jnp.dot(h, params["wout"], precision=hp) + params["bout"]
    model_out = _unpatchify(out_tok, PATCH, C, H, W)
    return c_skip * X + c_out * model_out


if __name__ == "__main__":
    key = jax.random.PRNGKey(0)
    k_x, k_s, k_c, k_p = jax.random.split(key, 4)

    B, C, H, W = 2, 4, 16, 16
    X = jax.random.normal(k_x, (B, C, H, W), jnp.float32)
    sigma = jax.random.uniform(k_s, (B,), jnp.float32, 0.0, 2.0)
    sigma = sigma.at[0].set(0.0)        # exercise the sigma==0 -> sigma_min branch
    cond = jax.random.randint(k_c, (B,), 0, NUM_CLASSES, jnp.int32)
    params = init_params(k_p, C)

    out = edm_dit_precond_forward(params, X, sigma, cond)
    out = jax.block_until_ready(out)

    ref = _reference_forward(params, X, sigma, cond)
    np.testing.assert_allclose(np.asarray(out), np.asarray(ref), rtol=2e-2, atol=2e-2)

    print("KERNEL_OK")
</pallas_src>

<mosaic_0001>
module attributes {stable_mosaic.version = 11 : i64} {
  func.func @_edm_dit_kernel(%arg0: i32, %arg1: memref<32x128xf32, #tpu.memory_space<vmem>>, %arg2: memref<32x1xf32, #tpu.memory_space<vmem>>, %arg3: memref<32x1xf32, #tpu.memory_space<vmem>>, %arg4: memref<32x1xf32, #tpu.memory_space<vmem>>, %arg5: memref<32x128xf32, #tpu.memory_space<vmem>>, %arg6: memref<128x128xbf16, #tpu.memory_space<vmem>>, %arg7: memref<128x128xbf16, #tpu.memory_space<vmem>>, %arg8: memref<1x128xf32, #tpu.memory_space<vmem>>, %arg9: memref<128x128xbf16, #tpu.memory_space<vmem>>, %arg10: memref<1x128xf32, #tpu.memory_space<vmem>>, %arg11: memref<128x128xbf16, #tpu.memory_space<vmem>>, %arg12: memref<1x128xf32, #tpu.memory_space<vmem>>, %arg13: memref<32x128xf32, #tpu.memory_space<vmem>>) attributes {dimension_semantics = [#tpu.dimension_semantics<parallel>], iteration_bounds = array<i64: 1>, scalar_prefetch = 0 : i64, scratch_operands = 0 : i64, tpu.core_type = #tpu.core_type<tc>, window_params = [{transform_indices = @transform_0, window_bounds = array<i64: 32, 128>}, {transform_indices = @transform_1, window_bounds = array<i64: 32, 1>}, {transform_indices = @transform_2, window_bounds = array<i64: 32, 1>}, {transform_indices = @transform_3, window_bounds = array<i64: 32, 1>}, {transform_indices = @transform_4, window_bounds = array<i64: 32, 128>}, {pipeline_mode = #tpu.pipeline_mode<synchronous>, transform_indices = @transform_5, window_bounds = array<i64: 128, 128>}, {pipeline_mode = #tpu.pipeline_mode<synchronous>, transform_indices = @transform_6, window_bounds = array<i64: 128, 128>}, {pipeline_mode = #tpu.pipeline_mode<synchronous>, transform_indices = @transform_7, window_bounds = array<i64: 1, 128>}, {pipeline_mode = #tpu.pipeline_mode<synchronous>, transform_indices = @transform_8, window_bounds = array<i64: 128, 128>}, {pipeline_mode = #tpu.pipeline_mode<synchronous>, transform_indices = @transform_9, window_bounds = array<i64: 1, 128>}, {pipeline_mode = #tpu.pipeline_mode<synchronous>, transform_indices = @transform_10, window_bounds = array<i64: 128, 128>}, {pipeline_mode = #tpu.pipeline_mode<synchronous>, transform_indices = @transform_11, window_bounds = array<i64: 1, 128>}, {transform_indices = @transform_12, window_bounds = array<i64: 32, 128>}]} {
    %c0 = arith.constant 0 : index
    %c0_0 = arith.constant 0 : index
    %0 = vector.load %arg1[%c0, %c0_0] : memref<32x128xf32, #tpu.memory_space<vmem>>, vector<32x128xf32>
    %c0_1 = arith.constant 0 : index
    %c0_2 = arith.constant 0 : index
    %1 = vector.load %arg2[%c0_1, %c0_2] : memref<32x1xf32, #tpu.memory_space<vmem>>, vector<32x1xf32>
    %2 = arith.truncf %0 : vector<32x128xf32> to vector<32x128xbf16>
    %c0_3 = arith.constant 0 : index
    %c0_4 = arith.constant 0 : index
    %3 = vector.load %arg6[%c0_3, %c0_4] : memref<128x128xbf16, #tpu.memory_space<vmem>>, vector<128x128xbf16>
    %cst = arith.constant dense<0.000000e+00> : vector<32x128xf32>
    %4 = tpu.matmul %2, %3, %cst {dimension_numbers = #tpu.dot_dimension_numbers<[1], [0], [0], [1], [0, 0, 1, 1], [], []>} : vector<32x128xbf16>, vector<128x128xbf16>, vector<32x128xf32> -> vector<32x128xf32>
    %5 = vector.broadcast %1 : vector<32x1xf32> to vector<32x128xf32>
    %6 = arith.mulf %5, %4 : vector<32x128xf32>
    %c0_5 = arith.constant 0 : index
    %c0_6 = arith.constant 0 : index
    %7 = vector.load %arg5[%c0_5, %c0_6] : memref<32x128xf32, #tpu.memory_space<vmem>>, vector<32x128xf32>
    %8 = arith.addf %6, %7 : vector<32x128xf32>
    %9 = arith.truncf %8 : vector<32x128xf32> to vector<32x128xbf16>
    %c0_7 = arith.constant 0 : index
    %c0_8 = arith.constant 0 : index
    %10 = vector.load %arg7[%c0_7, %c0_8] : memref<128x128xbf16, #tpu.memory_space<vmem>>, vector<128x128xbf16>
    %cst_9 = arith.constant dense<0.000000e+00> : vector<32x128xf32>
    %11 = tpu.matmul %9, %10, %cst_9 {dimension_numbers = #tpu.dot_dimension_numbers<[1], [0], [0], [1], [0, 0, 1, 1], [], []>} : vector<32x128xbf16>, vector<128x128xbf16>, vector<32x128xf32> -> vector<32x128xf32>
    %c0_10 = arith.constant 0 : index
    %c0_11 = arith.constant 0 : index
    %12 = vector.load %arg8[%c0_10, %c0_11] : memref<1x128xf32, #tpu.memory_space<vmem>>, vector<1x128xf32>
    %13 = vector.broadcast %12 : vector<1x128xf32> to vector<32x128xf32>
    %14 = arith.addf %11, %13 : vector<32x128xf32>
    %15 = arith.mulf %14, %14 : vector<32x128xf32>
    %16 = arith.mulf %14, %15 : vector<32x128xf32>
    %cst_12 = arith.constant 4.471500e-02 : f32
    %17 = vector.broadcast %cst_12 : f32 to vector<32x128xf32>
    %18 = arith.mulf %17, %16 : vector<32x128xf32>
    %19 = arith.addf %14, %18 : vector<32x128xf32>
    %cst_13 = arith.constant 0.797884583 : f32
    %20 = vector.broadcast %cst_13 : f32 to vector<32x128xf32>
    %21 = arith.mulf %20, %19 : vector<32x128xf32>
    %22 = math.tanh %21 : vector<32x128xf32>
    %cst_14 = arith.constant 1.000000e+00 : f32
    %23 = vector.broadcast %cst_14 : f32 to vector<32x128xf32>
    %24 = arith.addf %23, %22 : vector<32x128xf32>
    %cst_15 = arith.constant 5.000000e-01 : f32
    %25 = vector.broadcast %cst_15 : f32 to vector<32x128xf32>
    %26 = arith.mulf %25, %24 : vector<32x128xf32>
    %27 = arith.mulf %14, %26 : vector<32x128xf32>
    %28 = arith.truncf %27 : vector<32x128xf32> to vector<32x128xbf16>
    %c0_16 = arith.constant 0 : index
    %c0_17 = arith.constant 0 : index
    %29 = vector.load %arg9[%c0_16, %c0_17] : memref<128x128xbf16, #tpu.memory_space<vmem>>, vector<128x128xbf16>
    %cst_18 = arith.constant dense<0.000000e+00> : vector<32x128xf32>
    %30 = tpu.matmul %28, %29, %cst_18 {dimension_numbers = #tpu.dot_dimension_numbers<[1], [0], [0], [1], [0, 0, 1, 1], [], []>} : vector<32x128xbf16>, vector<128x128xbf16>, vector<32x128xf32> -> vector<32x128xf32>
    %c0_19 = arith.constant 0 : index
    %c0_20 = arith.constant 0 : index
    %31 = vector.load %arg10[%c0_19, %c0_20] : memref<1x128xf32, #tpu.memory_space<vmem>>, vector<1x128xf32>
    %32 = vector.broadcast %31 : vector<1x128xf32> to vector<32x128xf32>
    %33 = arith.addf %30, %32 : vector<32x128xf32>
    %34 = arith.truncf %33 : vector<32x128xf32> to vector<32x128xbf16>
    %c0_21 = arith.constant 0 : index
    %c0_22 = arith.constant 0 : index
    %35 = vector.load %arg11[%c0_21, %c0_22] : memref<128x128xbf16, #tpu.memory_space<vmem>>, vector<128x128xbf16>
    %cst_23 = arith.constant dense<0.000000e+00> : vector<32x128xf32>
    %36 = tpu.matmul %34, %35, %cst_23 {dimension_numbers = #tpu.dot_dimension_numbers<[1], [0], [0], [1], [0, 0, 1, 1], [], []>} : vector<32x128xbf16>, vector<128x128xbf16>, vector<32x128xf32> -> vector<32x128xf32>
    %c0_24 = arith.constant 0 : index
    %c0_25 = arith.constant 0 : index
    %37 = vector.load %arg12[%c0_24, %c0_25] : memref<1x128xf32, #tpu.memory_space<vmem>>, vector<1x128xf32>
    %38 = vector.broadcast %37 : vector<1x128xf32> to vector<32x128xf32>
    %39 = arith.addf %36, %38 : vector<32x128xf32>
    %c0_26 = arith.constant 0 : index
    %c0_27 = arith.constant 0 : index
    %40 = vector.load %arg3[%c0_26, %c0_27] : memref<32x1xf32, #tpu.memory_space<vmem>>, vector<32x1xf32>
    %41 = vector.broadcast %40 : vector<32x1xf32> to vector<32x128xf32>
    %42 = arith.mulf %41, %0 : vector<32x128xf32>
    %c0_28 = arith.constant 0 : index
    %c0_29 = arith.constant 0 : index
    %43 = vector.load %arg4[%c0_28, %c0_29] : memref<32x1xf32, #tpu.memory_space<vmem>>, vector<32x1xf32>
    %44 = vector.broadcast %43 : vector<32x1xf32> to vector<32x128xf32>
    %45 = arith.mulf %44, %39 : vector<32x128xf32>
    %46 = arith.addf %42, %45 : vector<32x128xf32>
    %c0_30 = arith.constant 0 : index
    %c0_31 = arith.constant 0 : index
    %47 = vector.load %arg13[%c0_30, %c0_31] : memref<32x128xf32, #tpu.memory_space<vmem>>, vector<32x128xf32>
    tpu.vector_store %arg13[%c0_30, %c0_31], %46 {strides = array<i32>} : memref<32x128xf32, #tpu.memory_space<vmem>>, vector<32x128xf32>,
    return
  }
  func.func @transform_0(%arg0: i32) -> (i32, i32) {
    %c0_i32 = arith.constant 0 : i32
    %c0_i32_0 = arith.constant 0 : i32
    return %arg0, %c0_i32 : i32, i32
  }
  func.func @transform_1(%arg0: i32) -> (i32, i32) {
    %c0_i32 = arith.constant 0 : i32
    %c0_i32_0 = arith.constant 0 : i32
    return %arg0, %c0_i32 : i32, i32
  }
  func.func @transform_2(%arg0: i32) -> (i32, i32) {
    %c0_i32 = arith.constant 0 : i32
    %c0_i32_0 = arith.constant 0 : i32
    return %arg0, %c0_i32 : i32, i32
  }
  func.func @transform_3(%arg0: i32) -> (i32, i32) {
    %c0_i32 = arith.constant 0 : i32
    %c0_i32_0 = arith.constant 0 : i32
    return %arg0, %c0_i32 : i32, i32
  }
  func.func @transform_4(%arg0: i32) -> (i32, i32) {
    %c0_i32 = arith.constant 0 : i32
    %c0_i32_0 = arith.constant 0 : i32
    return %arg0, %c0_i32 : i32, i32
  }
  func.func @transform_5(%arg0: i32) -> (i32, i32) {
    %c0_i32 = arith.constant 0 : i32
    %c0_i32_0 = arith.constant 0 : i32
    %c0_i32_1 = arith.constant 0 : i32
    return %c0_i32, %c0_i32_0 : i32, i32
  }
  func.func @transform_6(%arg0: i32) -> (i32, i32) {
    %c0_i32 = arith.constant 0 : i32
    %c0_i32_0 = arith.constant 0 : i32
    %c0_i32_1 = arith.constant 0 : i32
    return %c0_i32, %c0_i32_0 : i32, i32
  }
  func.func @transform_7(%arg0: i32) -> (i32, i32) {
    %c0_i32 = arith.constant 0 : i32
    %c0_i32_0 = arith.constant 0 : i32
    %c0_i32_1 = arith.constant 0 : i32
    return %c0_i32, %c0_i32_0 : i32, i32
  }
  func.func @transform_8(%arg0: i32) -> (i32, i32) {
    %c0_i32 = arith.constant 0 : i32
    %c0_i32_0 = arith.constant 0 : i32
    %c0_i32_1 = arith.constant 0 : i32
    return %c0_i32, %c0_i32_0 : i32, i32
  }
  func.func @transform_9(%arg0: i32) -> (i32, i32) {
    %c0_i32 = arith.constant 0 : i32
    %c0_i32_0 = arith.constant 0 : i32
    %c0_i32_1 = arith.constant 0 : i32
    return %c0_i32, %c0_i32_0 : i32, i32
  }
  func.func @transform_10(%arg0: i32) -> (i32, i32) {
    %c0_i32 = arith.constant 0 : i32
    %c0_i32_0 = arith.constant 0 : i32
    %c0_i32_1 = arith.constant 0 : i32
    return %c0_i32, %c0_i32_0 : i32, i32
  }
  func.func @transform_11(%arg0: i32) -> (i32, i32) {
    %c0_i32 = arith.constant 0 : i32
    %c0_i32_0 = arith.constant 0 : i32
    %c0_i32_1 = arith.constant 0 : i32
    return %c0_i32, %c0_i32_0 : i32, i32
  }
  func.func @transform_12(%arg0: i32) -> (i32, i32) {
    %c0_i32 = arith.constant 0 : i32
    %c0_i32_0 = arith.constant 0 : i32
    return %arg0, %c0_i32 : i32, i32
  }
}

</mosaic_0001>

<llo_original>
// kernel: edm_dit_precond_forward.1
$region0: #{edm_dit_precond_forward.1}
  #allocation0 [shape = 'u32[]', space=smem, size = 0x4, offset = 0x4, fixed_abs, tag = 'smem constant byte address 0x4 - core index']
  #allocation1 [shape = 'u32[144,128]{1,0:T(1,128)}', space=vmem, size = 0x12000, scoped, tag = 'internal scratch']
  %s0 = inlined_call_operand.vmem [shape: f32[32,128], index: 0, kind: input, shape index: {}]
  %s1 = inlined_call_operand.vmem [shape: f32[32,1], index: 1, kind: input, shape index: {}]
  %s2 = inlined_call_operand.vmem [shape: f32[32,1], index: 2, kind: input, shape index: {}]
  %s3 = inlined_call_operand.vmem [shape: f32[32,1], index: 3, kind: input, shape index: {}]
  %s4 = inlined_call_operand.vmem [shape: f32[32,128], index: 4, kind: input, shape index: {}]
  %s5 = inlined_call_operand.vmem [shape: bf16[128,128], index: 5, kind: input, shape index: {}]
  %s6 = inlined_call_operand.vmem [shape: bf16[128,128], index: 6, kind: input, shape index: {}]
  %s7 = inlined_call_operand.vmem [shape: f32[1,128], index: 7, kind: input, shape index: {}]
  %s8 = inlined_call_operand.vmem [shape: bf16[128,128], index: 8, kind: input, shape index: {}]
  %s9 = inlined_call_operand.vmem [shape: f32[1,128], index: 9, kind: input, shape index: {}]
  %s10 = inlined_call_operand.vmem [shape: bf16[128,128], index: 10, kind: input, shape index: {}]
  %s11 = inlined_call_operand.vmem [shape: f32[1,128], index: 11, kind: input, shape index: {}]
  %s12 = inlined_call_operand.vmem [shape: f32[32,128], index: 12, kind: output, shape index: {}]
  %s13 = sld [smem:[#allocation0]]
  $region58: #{edm_dit_precond_forward.1} parent=0
    _
  %s15 = ssub.s32 1, %s13
  %s16 = scalar_select 0, %s15, %s13
  // Predicated region
  $region2: #{edm_dit_precond_forward.1} parent=0 // pred_check
    _
  $region3: #{edm_dit_precond_forward.1} parent=0 // pred_check_branch
    %18 = sbr.rel (0) target = $region5
  $region4: #{edm_dit_precond_forward.1} parent=0 // pred_region
    _
  $region5: #{edm_dit_precond_forward.1} parent=0 // pred_fallthru
    _
  // Predicated region
  $region6: #{edm_dit_precond_forward.1} parent=0 // pred_check
    _
  $region7: #{edm_dit_precond_forward.1} parent=0 // pred_check_branch
    %20 = sbr.rel (0) target = $region9
  $region8: #{edm_dit_precond_forward.1} parent=0 // pred_region
    _
  $region9: #{edm_dit_precond_forward.1} parent=0 // pred_fallthru
    _
  // Predicated region
  $region10: #{edm_dit_precond_forward.1} parent=0 // pred_check
    _
  $region11: #{edm_dit_precond_forward.1} parent=0 // pred_check_branch
    %22 = sbr.rel (0) target = $region13
  $region12: #{edm_dit_precond_forward.1} parent=0 // pred_region
    _
  $region13: #{edm_dit_precond_forward.1} parent=0 // pred_fallthru
    _
  // Predicated region
  $region14: #{edm_dit_precond_forward.1} parent=0 // pred_check
    _
  $region15: #{edm_dit_precond_forward.1} parent=0 // pred_check_branch
    %24 = sbr.rel (0) target = $region17
  $region16: #{edm_dit_precond_forward.1} parent=0 // pred_region
    _
  $region17: #{edm_dit_precond_forward.1} parent=0 // pred_fallthru
    _
  // Predicated region
  $region18: #{edm_dit_precond_forward.1} parent=0 // pred_check
    _
  $region19: #{edm_dit_precond_forward.1} parent=0 // pred_check_branch
    %26 = sbr.rel (0) target = $region21
  $region20: #{edm_dit_precond_forward.1} parent=0 // pred_region
    _
  $region21: #{edm_dit_precond_forward.1} parent=0 // pred_fallthru
    _
  // Predicated region
  $region22: #{edm_dit_precond_forward.1} parent=0 // pred_check
    _
  $region23: #{edm_dit_precond_forward.1} parent=0 // pred_check_branch
    %28 = sbr.rel (0) target = $region25
  $region24: #{edm_dit_precond_forward.1} parent=0 // pred_region
    _
  $region25: #{edm_dit_precond_forward.1} parent=0 // pred_fallthru
    _
  // Predicated region
  $region26: #{edm_dit_precond_forward.1} parent=0 // pred_check
    _
  $region27: #{edm_dit_precond_forward.1} parent=0 // pred_check_branch
    %30 = sbr.rel (0) target = $region29
  $region28: #{edm_dit_precond_forward.1} parent=0 // pred_region
    _
  $region29: #{edm_dit_precond_forward.1} parent=0 // pred_fallthru
    _
  // Predicated region
  $region30: #{edm_dit_precond_forward.1} parent=0 // pred_check
    _
  $region31: #{edm_dit_precond_forward.1} parent=0 // pred_check_branch
    %32 = sbr.rel (0) target = $region33
  $region32: #{edm_dit_precond_forward.1} parent=0 // pred_region
    _
  $region33: #{edm_dit_precond_forward.1} parent=0 // pred_fallthru
    _
  // Predicated region
  $region34: #{edm_dit_precond_forward.1} parent=0 // pred_check
    _
  $region35: #{edm_dit_precond_forward.1} parent=0 // pred_check_branch
    %34 = sbr.rel (0) target = $region37
  $region36: #{edm_dit_precond_forward.1} parent=0 // pred_region
    _
  $region37: #{edm_dit_precond_forward.1} parent=0 // pred_fallthru
    _
  // Predicated region
  $region38: #{edm_dit_precond_forward.1} parent=0 // pred_check
    _
  $region39: #{edm_dit_precond_forward.1} parent=0 // pred_check_branch
    %36 = sbr.rel (0) target = $region41
  $region40: #{edm_dit_precond_forward.1} parent=0 // pred_region
    _
  $region41: #{edm_dit_precond_forward.1} parent=0 // pred_fallthru
    _
  // Predicated region
  $region42: #{edm_dit_precond_forward.1} parent=0 // pred_check
    _
  $region43: #{edm_dit_precond_forward.1} parent=0 // pred_check_branch
    %38 = sbr.rel (0) target = $region45
  $region44: #{edm_dit_precond_forward.1} parent=0 // pred_region
    _
  $region45: #{edm_dit_precond_forward.1} parent=0 // pred_fallthru
    _
  // Predicated region
  $region46: #{edm_dit_precond_forward.1} parent=0 // pred_check
    _
  $region47: #{edm_dit_precond_forward.1} parent=0 // pred_check_branch
    %40 = sbr.rel (0) target = $region49
  $region48: #{edm_dit_precond_forward.1} parent=0 // pred_region
    _
  $region49: #{edm_dit_precond_forward.1} parent=0 // pred_fallthru
    _
  %v42 = vld [vmem:[%s0] sm:$0xff]
  %v43 = vld [vmem:[%s0 + $0x8] sm:$0xff]
  %v44 = vld [vmem:[%s0 + $0x10] sm:$0xff]
  %v45 = vld [vmem:[%s0 + $0x18] sm:$0xff]
  %v46 = vld [vmem:[%s1] sm:$0xff]
  %v47 = vld [vmem:[%s1 + $0x8] sm:$0xff]
  %v48 = vld [vmem:[%s1 + $0x10] sm:$0xff]
  %v49 = vld [vmem:[%s1 + $0x18] sm:$0xff]
  %v50 = vpack.c.bf16 %v43, %v42
  %v51 = vpack.c.bf16 %v45, %v44
  %v52 = vld [vmem:[%s5] sm:$0xf]
  %v53 = vld [vmem:[%s5 + $0x4] sm:$0xf]
  %v54 = vld [vmem:[%s5 + $0x8] sm:$0xf]
  %v55 = vld [vmem:[%s5 + $0xc] sm:$0xf]
  %v56 = vld [vmem:[%s5 + $0x10] sm:$0xf]
  %v57 = vld [vmem:[%s5 + $0x14] sm:$0xf]
  %v58 = vld [vmem:[%s5 + $0x18] sm:$0xf]
  %v59 = vld [vmem:[%s5 + $0x1c] sm:$0xf]
  %v60 = vld [vmem:[%s5 + $0x20] sm:$0xf]
  %v61 = vld [vmem:[%s5 + $0x24] sm:$0xf]
  %v62 = vld [vmem:[%s5 + $0x28] sm:$0xf]
  %v63 = vld [vmem:[%s5 + $0x2c] sm:$0xf]
  %v64 = vld [vmem:[%s5 + $0x30] sm:$0xf]
  %v65 = vld [vmem:[%s5 + $0x34] sm:$0xf]
  %v66 = vld [vmem:[%s5 + $0x38] sm:$0xf]
  %v67 = vld [vmem:[%s5 + $0x3c] sm:$0xf]
  %v84 = vunpack.c.l.b16 %v52
  %v85 = vunpack.c.l.b16 %v53
  %v86 = vunpack.c.l.b16 %v54
  %v87 = vunpack.c.l.b16 %v55
  %v88 = vunpack.c.l.b16 %v56
  %v89 = vunpack.c.l.b16 %v57
  %v90 = vunpack.c.l.b16 %v58
  %v91 = vunpack.c.l.b16 %v59
  %v92 = vunpack.c.l.b16 %v60
  %v93 = vunpack.c.l.b16 %v61
  %v94 = vunpack.c.l.b16 %v62
  %v95 = vunpack.c.l.b16 %v63
  %v96 = vunpack.c.l.b16 %v64
  %v97 = vunpack.c.l.b16 %v65
  %v98 = vunpack.c.l.b16 %v66
  %v99 = vunpack.c.l.b16 %v67
  %v100 = vpack.c.b16 %v85, %v84
  %v101 = vpack.c.b16 %v87, %v86
  %v102 = vpack.c.b16 %v89, %v88
  %v103 = vpack.c.b16 %v91, %v90
  %v104 = vpack.c.b16 %v93, %v92
  %v105 = vpack.c.b16 %v95, %v94
  %v106 = vpack.c.b16 %v97, %v96
  %v107 = vpack.c.b16 %v99, %v98
  %116 = vmatprep.subr.bf16.mxu0 0
  %117 = vmatpush1.bf16.msra.mxu0 %v100
  %118 = vmatprep.subr.bf16.mxu0 0
  %119 = vmatpush1.bf16.msra.mxu0 %v101
  %120 = vmatprep.subr.bf16.mxu0 0
  %121 = vmatpush1.bf16.msra.mxu0 %v102
  %122 = vmatprep.subr.bf16.mxu0 0
  %123 = vmatpush1.bf16.msra.mxu0 %v103
  %124 = vmatprep.subr.bf16.mxu0 0
  %125 = vmatpush1.bf16.msra.mxu0 %v104
  %126 = vmatprep.subr.bf16.mxu0 0
  %127 = vmatpush1.bf16.msra.mxu0 %v105
  %128 = vmatprep.subr.bf16.mxu0 0
  %129 = vmatpush1.bf16.msra.mxu0 %v106
  %130 = vmatprep.subr.bf16.mxu0 0
  %131 = vmatpush1.bf16.msra.mxu0 %v107
  %132 = vmatprep.subr.bf16.mxu0 0
  %133 = vmatpush1.bf16.msra.mxu0 0
  %134 = vmatprep.subr.bf16.mxu0 0
  %135 = vmatpush1.bf16.msra.mxu0 0
  %136 = vmatprep.subr.bf16.mxu0 0
  %137 = vmatpush1.bf16.msra.mxu0 0
  %138 = vmatprep.subr.bf16.mxu0 0
  %139 = vmatpush1.bf16.msra.mxu0 0
  %140 = vmatprep.subr.bf16.mxu0 0
  %141 = vmatpush1.bf16.msra.mxu0 0
  %142 = vmatprep.subr.bf16.mxu0 0
  %143 = vmatpush1.bf16.msra.mxu0 0
  %144 = vmatprep.subr.bf16.mxu0 0
  %145 = vmatpush1.bf16.msra.mxu0 0
  %146 = vmatprep.subr.bf16.mxu0 0
  %147 = vmatpush1.bf16.msra.mxu0 0
  %148 = vmatprep.mubr.bf16.mxu0 0
  %149 = vmatmul.mubr.bf16.gmra.mrb[0].mxu0 %v50
  %v150 = vpop.f32.mrb[0].mxu0
  %v151 = vadd.f32 0.0, %v150
  %v152 = vpop.f32.mrb[0].mxu0
  %v153 = vpop.f32.mrb[0].mxu0
  %v154 = vadd.f32 0.0, %v153
  %v155 = vpop.f32.mrb[0].mxu0
  %156 = vmatprep.mubr.bf16.mxu0 0
  %157 = vmatmul.mubr.bf16.gmra.mrb[0].mxu0 %v51
  %v158 = vpop.f32.mrb[0].mxu0
  %v159 = vadd.f32 0.0, %v158
  %v160 = vpop.f32.mrb[0].mxu0
  %v161 = vpop.f32.mrb[0].mxu0
  %v162 = vadd.f32 0.0, %v161
  %v163 = vpop.f32.mrb[0].mxu0
  %164 = vdwg.mxu0
  %166 = vset.pattern.permute.xlu0 0
  %167 = vperm.xlu0 %166, %v46
  %v168 = vpop.permute.xlu0 %167
  %171 = vset.pattern.permute.xlu0 0
  %172 = vperm.xlu0 %171, %v47
  %v173 = vpop.permute.xlu0 %172
  %176 = vset.pattern.permute.xlu0 0
  %177 = vperm.xlu0 %176, %v48
  %v178 = vpop.permute.xlu0 %177
  %181 = vset.pattern.permute.xlu0 0
  %182 = vperm.xlu0 %181, %v49
  %v183 = vpop.permute.xlu0 %182
  %v185 = vmul.f32 %v168, %v151
  %v186 = vmul.f32 %v173, %v154
  %v187 = vmul.f32 %v178, %v159
  %v188 = vmul.f32 %v183, %v162
  %v189 = vld [vmem:[%s4] sm:$0xff]
  %v190 = vld [vmem:[%s4 + $0x8] sm:$0xff]
  %v191 = vld [vmem:[%s4 + $0x10] sm:$0xff]
  %v192 = vld [vmem:[%s4 + $0x18] sm:$0xff]
  %v193 = vadd.f32 %v185, %v189
  %v194 = vadd.f32 %v186, %v190
  %v195 = vadd.f32 %v187, %v191
  %v196 = vadd.f32 %v188, %v192
  %v197 = vpack.c.bf16 %v194, %v193
  %v198 = vpack.c.bf16 %v196, %v195
  %v199 = vld [vmem:[%s6] sm:$0xf]
  %v200 = vld [vmem:[%s6 + $0x4] sm:$0xf]
  %v201 = vld [vmem:[%s6 + $0x8] sm:$0xf]
  %v202 = vld [vmem:[%s6 + $0xc] sm:$0xf]
  %v203 = vld [vmem:[%s6 + $0x10] sm:$0xf]
  %v204 = vld [vmem:[%s6 + $0x14] sm:$0xf]
  %v205 = vld [vmem:[%s6 + $0x18] sm:$0xf]
  %v206 = vld [vmem:[%s6 + $0x1c] sm:$0xf]
  %v207 = vld [vmem:[%s6 + $0x20] sm:$0xf]
  %v208 = vld [vmem:[%s6 + $0x24] sm:$0xf]
  %v209 = vld [vmem:[%s6 + $0x28] sm:$0xf]
  %v210 = vld [vmem:[%s6 + $0x2c] sm:$0xf]
  %v211 = vld [vmem:[%s6 + $0x30] sm:$0xf]
  %v212 = vld [vmem:[%s6 + $0x34] sm:$0xf]
  %v213 = vld [vmem:[%s6 + $0x38] sm:$0xf]
  %v214 = vld [vmem:[%s6 + $0x3c] sm:$0xf]
  %v215 = vld [vmem:[%s7] sm:$0x1]
  %v217 = vlaneseq
  %v218 = vshrl.u32 %v217, 7
  %v219 = vsub.s32 0, %v218
  %v220 = vrot.slane %v215, %v219
  %v238 = vunpack.c.l.b16 %v199
  %v239 = vunpack.c.l.b16 %v200
  %v240 = vunpack.c.l.b16 %v201
  %v241 = vunpack.c.l.b16 %v202
  %v242 = vunpack.c.l.b16 %v203
  %v243 = vunpack.c.l.b16 %v204
  %v244 = vunpack.c.l.b16 %v205
  %v245 = vunpack.c.l.b16 %v206
  %v246 = vunpack.c.l.b16 %v207
  %v247 = vunpack.c.l.b16 %v208
  %v248 = vunpack.c.l.b16 %v209
  %v249 = vunpack.c.l.b16 %v210
  %v250 = vunpack.c.l.b16 %v211
  %v251 = vunpack.c.l.b16 %v212
  %v252 = vunpack.c.l.b16 %v213
  %v253 = vunpack.c.l.b16 %v214
  %v254 = vpack.c.b16 %v239, %v238
  %v255 = vpack.c.b16 %v241, %v240
  %v256 = vpack.c.b16 %v243, %v242
  %v257 = vpack.c.b16 %v245, %v244
  %v258 = vpack.c.b16 %v247, %v246
  %v259 = vpack.c.b16 %v249, %v248
  %v260 = vpack.c.b16 %v251, %v250
  %v261 = vpack.c.b16 %v253, %v252
  %270 = vmatprep.subr.bf16.mxu0 0
  %271 = vmatpush1.bf16.msra.mxu0 %v254
  %272 = vmatprep.subr.bf16.mxu0 0
  %273 = vmatpush1.bf16.msra.mxu0 %v255
  %274 = vmatprep.subr.bf16.mxu0 0
  %275 = vmatpush1.bf16.msra.mxu0 %v256
  %276 = vmatprep.subr.bf16.mxu0 0
  %277 = vmatpush1.bf16.msra.mxu0 %v257
  %278 = vmatprep.subr.bf16.mxu0 0
  %279 = vmatpush1.bf16.msra.mxu0 %v258
  %280 = vmatprep.subr.bf16.mxu0 0
  %281 = vmatpush1.bf16.msra.mxu0 %v259
  %282 = vmatprep.subr.bf16.mxu0 0
  %283 = vmatpush1.bf16.msra.mxu0 %v260
  %284 = vmatprep.subr.bf16.mxu0 0
  %285 = vmatpush1.bf16.msra.mxu0 %v261
  %286 = vmatprep.subr.bf16.mxu0 0
  %287 = vmatpush1.bf16.msra.mxu0 0
  %288 = vmatprep.subr.bf16.mxu0 0
  %289 = vmatpush1.bf16.msra.mxu0 0
  %290 = vmatprep.subr.bf16.mxu0 0
  %291 = vmatpush1.bf16.msra.mxu0 0
  %292 = vmatprep.subr.bf16.mxu0 0
  %293 = vmatpush1.bf16.msra.mxu0 0
  %294 = vmatprep.subr.bf16.mxu0 0
  %295 = vmatpush1.bf16.msra.mxu0 0
  %296 = vmatprep.subr.bf16.mxu0 0
  %297 = vmatpush1.bf16.msra.mxu0 0
  %298 = vmatprep.subr.bf16.mxu0 0
  %299 = vmatpush1.bf16.msra.mxu0 0
  %300 = vmatprep.subr.bf16.mxu0 0
  %301 = vmatpush1.bf16.msra.mxu0 0
  %302 = vmatprep.mubr.bf16.mxu0 0
  %303 = vmatmul.mubr.bf16.gmra.mrb[0].mxu0 %v197
  %v304 = vpop.f32.mrb[0].mxu0
  %v305 = vadd.f32 %v220, %v304
  %v306 = vpop.f32.mrb[0].mxu0
  %v307 = vpop.f32.mrb[0].mxu0
  %v308 = vadd.f32 %v220, %v307
  %v309 = vpop.f32.mrb[0].mxu0
  %310 = vmatprep.mubr.bf16.mxu0 0
  %311 = vmatmul.mubr.bf16.gmra.mrb[0].mxu0 %v198
  %v312 = vpop.f32.mrb[0].mxu0
  %v313 = vadd.f32 %v220, %v312
  %v314 = vpop.f32.mrb[0].mxu0
  %v315 = vpop.f32.mrb[0].mxu0
  %v316 = vadd.f32 %v220, %v315
  %v317 = vpop.f32.mrb[0].mxu0
  %318 = vdwg.mxu0
  %v319 = vmul.f32 %v305, %v305
  %v320 = vmul.f32 %v308, %v308
  %v321 = vmul.f32 %v313, %v313
  %v322 = vmul.f32 %v316, %v316
  %v323 = vmul.f32 %v305, %v319
  %v324 = vmul.f32 %v308, %v320
  %v325 = vmul.f32 %v313, %v321
  %v326 = vmul.f32 %v316, %v322
  %v327 = vmul.f32 %v323, 0.044715
  %v328 = vmul.f32 %v324, 0.044715
  %v329 = vmul.f32 %v325, 0.044715
  %v330 = vmul.f32 %v326, 0.044715
  %v331 = vadd.f32 %v305, %v327
  %v332 = vadd.f32 %v308, %v328
  %v333 = vadd.f32 %v313, %v329
  %v334 = vadd.f32 %v316, %v330
  %v335 = vmul.f32 %v331, 0.7978846
  %v336 = vmul.f32 %v332, 0.7978846
  %v337 = vmul.f32 %v333, 0.7978846
  %v338 = vmul.f32 %v334, 0.7978846
  %v339 = vtanh.pop %v335
  %v340 = vtanh.pop %v336
  %v341 = vtanh.pop %v337
  %v342 = vtanh.pop %v338
  %v343 = vadd.f32 %v339, 1.0
  %v344 = vadd.f32 %v340, 1.0
  %v345 = vadd.f32 %v341, 1.0
  %v346 = vadd.f32 %v342, 1.0
  %v347 = vmul.f32 %v343, 0.5
  %v348 = vmul.f32 %v344, 0.5
  %v349 = vmul.f32 %v345, 0.5
  %v350 = vmul.f32 %v346, 0.5
  %v351 = vmul.f32 %v305, %v347
  %v352 = vmul.f32 %v308, %v348
  %v353 = vmul.f32 %v313, %v349
  %v354 = vmul.f32 %v316, %v350
  %v355 = vpack.c.bf16 %v352, %v351
  %v356 = vpack.c.bf16 %v354, %v353
  %v357 = vld [vmem:[%s8] sm:$0xf]
  %v358 = vld [vmem:[%s8 + $0x4] sm:$0xf]
  %v359 = vld [vmem:[%s8 + $0x8] sm:$0xf]
  %v360 = vld [vmem:[%s8 + $0xc] sm:$0xf]
  %v361 = vld [vmem:[%s8 + $0x10] sm:$0xf]
  %v362 = vld [vmem:[%s8 + $0x14] sm:$0xf]
  %v363 = vld [vmem:[%s8 + $0x18] sm:$0xf]
  %v364 = vld [vmem:[%s8 + $0x1c] sm:$0xf]
  %v365 = vld [vmem:[%s8 + $0x20] sm:$0xf]
  %v366 = vld [vmem:[%s8 + $0x24] sm:$0xf]
  %v367 = vld [vmem:[%s8 + $0x28] sm:$0xf]
  %v368 = vld [vmem:[%s8 + $0x2c] sm:$0xf]
  %v369 = vld [vmem:[%s8 + $0x30] sm:$0xf]
  %v370 = vld [vmem:[%s8 + $0x34] sm:$0xf]
  %v371 = vld [vmem:[%s8 + $0x38] sm:$0xf]
  %v372 = vld [vmem:[%s8 + $0x3c] sm:$0xf]
  %v373 = vld [vmem:[%s9] sm:$0x1]
  %v375 = vlaneseq
  %v376 = vshrl.u32 %v375, 7
  %v377 = vsub.s32 0, %v376
  %v378 = vrot.slane %v373, %v377
  %v396 = vunpack.c.l.b16 %v357
  %v397 = vunpack.c.l.b16 %v358
  %v398 = vunpack.c.l.b16 %v359
  %v399 = vunpack.c.l.b16 %v360
  %v400 = vunpack.c.l.b16 %v361
  %v401 = vunpack.c.l.b16 %v362
  %v402 = vunpack.c.l.b16 %v363
  %v403 = vunpack.c.l.b16 %v364
  %v404 = vunpack.c.l.b16 %v365
  %v405 = vunpack.c.l.b16 %v366
  %v406 = vunpack.c.l.b16 %v367
  %v407 = vunpack.c.l.b16 %v368
  %v408 = vunpack.c.l.b16 %v369
  %v409 = vunpack.c.l.b16 %v370
  %v410 = vunpack.c.l.b16 %v371
  %v411 = vunpack.c.l.b16 %v372
  %v412 = vpack.c.b16 %v397, %v396
  %v413 = vpack.c.b16 %v399, %v398
  %v414 = vpack.c.b16 %v401, %v400
  %v415 = vpack.c.b16 %v403, %v402
  %v416 = vpack.c.b16 %v405, %v404
  %v417 = vpack.c.b16 %v407, %v406
  %v418 = vpack.c.b16 %v409, %v408
  %v419 = vpack.c.b16 %v411, %v410
  %428 = vmatprep.subr.bf16.mxu0 0
  %429 = vmatpush1.bf16.msra.mxu0 %v412
  %430 = vmatprep.subr.bf16.mxu0 0
  %431 = vmatpush1.bf16.msra.mxu0 %v413
  %432 = vmatprep.subr.bf16.mxu0 0
  %433 = vmatpush1.bf16.msra.mxu0 %v414
  %434 = vmatprep.subr.bf16.mxu0 0
  %435 = vmatpush1.bf16.msra.mxu0 %v415
  %436 = vmatprep.subr.bf16.mxu0 0
  %437 = vmatpush1.bf16.msra.mxu0 %v416
  %438 = vmatprep.subr.bf16.mxu0 0
  %439 = vmatpush1.bf16.msra.mxu0 %v417
  %440 = vmatprep.subr.bf16.mxu0 0
  %441 = vmatpush1.bf16.msra.mxu0 %v418
  %442 = vmatprep.subr.bf16.mxu0 0
  %443 = vmatpush1.bf16.msra.mxu0 %v419
  %444 = vmatprep.subr.bf16.mxu0 0
  %445 = vmatpush1.bf16.msra.mxu0 0
  %446 = vmatprep.subr.bf16.mxu0 0
  %447 = vmatpush1.bf16.msra.mxu0 0
  %448 = vmatprep.subr.bf16.mxu0 0
  %449 = vmatpush1.bf16.msra.mxu0 0
  %450 = vmatprep.subr.bf16.mxu0 0
  %451 = vmatpush1.bf16.msra.mxu0 0
  %452 = vmatprep.subr.bf16.mxu0 0
  %453 = vmatpush1.bf16.msra.mxu0 0
  %454 = vmatprep.subr.bf16.mxu0 0
  %455 = vmatpush1.bf16.msra.mxu0 0
  %456 = vmatprep.subr.bf16.mxu0 0
  %457 = vmatpush1.bf16.msra.mxu0 0
  %458 = vmatprep.subr.bf16.mxu0 0
  %459 = vmatpush1.bf16.msra.mxu0 0
  %460 = vmatprep.mubr.bf16.mxu0 0
  %461 = vmatmul.mubr.bf16.gmra.mrb[0].mxu0 %v355
  %v462 = vpop.f32.mrb[0].mxu0
  %v463 = vadd.f32 %v378, %v462
  %v464 = vpop.f32.mrb[0].mxu0
  %v465 = vpop.f32.mrb[0].mxu0
  %v466 = vadd.f32 %v378, %v465
  %v467 = vpop.f32.mrb[0].mxu0
  %468 = vmatprep.mubr.bf16.mxu0 0
  %469 = vmatmul.mubr.bf16.gmra.mrb[0].mxu0 %v356
  %v470 = vpop.f32.mrb[0].mxu0
  %v471 = vadd.f32 %v378, %v470
  %v472 = vpop.f32.mrb[0].mxu0
  %v473 = vpop.f32.mrb[0].mxu0
  %v474 = vadd.f32 %v378, %v473
  %v475 = vpop.f32.mrb[0].mxu0
  %476 = vdwg.mxu0
  %v477 = vpack.c.bf16 %v466, %v463
  %v478 = vpack.c.bf16 %v474, %v471
  %v479 = vld [vmem:[%s10] sm:$0xf]
  %v480 = vld [vmem:[%s10 + $0x4] sm:$0xf]
  %v481 = vld [vmem:[%s10 + $0x8] sm:$0xf]
  %v482 = vld [vmem:[%s10 + $0xc] sm:$0xf]
  %v483 = vld [vmem:[%s10 + $0x10] sm:$0xf]
  %v484 = vld [vmem:[%s10 + $0x14] sm:$0xf]
  %v485 = vld [vmem:[%s10 + $0x18] sm:$0xf]
  %v486 = vld [vmem:[%s10 + $0x1c] sm:$0xf]
  %v487 = vld [vmem:[%s10 + $0x20] sm:$0xf]
  %v488 = vld [vmem:[%s10 + $0x24] sm:$0xf]
  %v489 = vld [vmem:[%s10 + $0x28] sm:$0xf]
  %v490 = vld [vmem:[%s10 + $0x2c] sm:$0xf]
  %v491 = vld [vmem:[%s10 + $0x30] sm:$0xf]
  %v492 = vld [vmem:[%s10 + $0x34] sm:$0xf]
  %v493 = vld [vmem:[%s10 + $0x38] sm:$0xf]
  %v494 = vld [vmem:[%s10 + $0x3c] sm:$0xf]
  %v495 = vld [vmem:[%s11] sm:$0x1]
  %v497 = vlaneseq
  %v498 = vshrl.u32 %v497, 7
  %v499 = vsub.s32 0, %v498
  %v500 = vrot.slane %v495, %v499
  %v518 = vunpack.c.l.b16 %v479
  %v519 = vunpack.c.l.b16 %v480
  %v520 = vunpack.c.l.b16 %v481
  %v521 = vunpack.c.l.b16 %v482
  %v522 = vunpack.c.l.b16 %v483
  %v523 = vunpack.c.l.b16 %v484
  %v524 = vunpack.c.l.b16 %v485
  %v525 = vunpack.c.l.b16 %v486
  %v526 = vunpack.c.l.b16 %v487
  %v527 = vunpack.c.l.b16 %v488
  %v528 = vunpack.c.l.b16 %v489
  %v529 = vunpack.c.l.b16 %v490
  %v530 = vunpack.c.l.b16 %v491
  %v531 = vunpack.c.l.b16 %v492
  %v532 = vunpack.c.l.b16 %v493
  %v533 = vunpack.c.l.b16 %v494
  %v534 = vpack.c.b16 %v519, %v518
  %v535 = vpack.c.b16 %v521, %v520
  %v536 = vpack.c.b16 %v523, %v522
  %v537 = vpack.c.b16 %v525, %v524
  %v538 = vpack.c.b16 %v527, %v526
  %v539 = vpack.c.b16 %v529, %v528
  %v540 = vpack.c.b16 %v531, %v530
  %v541 = vpack.c.b16 %v533, %v532
  %550 = vmatprep.subr.bf16.mxu0 0
  %551 = vmatpush1.bf16.msra.mxu0 %v534
  %552 = vmatprep.subr.bf16.mxu0 0
  %553 = vmatpush1.bf16.msra.mxu0 %v535
  %554 = vmatprep.subr.bf16.mxu0 0
  %555 = vmatpush1.bf16.msra.mxu0 %v536
  %556 = vmatprep.subr.bf16.mxu0 0
  %557 = vmatpush1.bf16.msra.mxu0 %v537
  %558 = vmatprep.subr.bf16.mxu0 0
  %559 = vmatpush1.bf16.msra.mxu0 %v538
  %560 = vmatprep.subr.bf16.mxu0 0
  %561 = vmatpush1.bf16.msra.mxu0 %v539
  %562 = vmatprep.subr.bf16.mxu0 0
  %563 = vmatpush1.bf16.msra.mxu0 %v540
  %564 = vmatprep.subr.bf16.mxu0 0
  %565 = vmatpush1.bf16.msra.mxu0 %v541
  %566 = vmatprep.subr.bf16.mxu0 0
  %567 = vmatpush1.bf16.msra.mxu0 0
  %568 = vmatprep.subr.bf16.mxu0 0
  %569 = vmatpush1.bf16.msra.mxu0 0
  %570 = vmatprep.subr.bf16.mxu0 0
  %571 = vmatpush1.bf16.msra.mxu0 0
  %572 = vmatprep.subr.bf16.mxu0 0
  %573 = vmatpush1.bf16.msra.mxu0 0
  %574 = vmatprep.subr.bf16.mxu0 0
  %575 = vmatpush1.bf16.msra.mxu0 0
  %576 = vmatprep.subr.bf16.mxu0 0
  %577 = vmatpush1.bf16.msra.mxu0 0
  %578 = vmatprep.subr.bf16.mxu0 0
  %579 = vmatpush1.bf16.msra.mxu0 0
  %580 = vmatprep.subr.bf16.mxu0 0
  %581 = vmatpush1.bf16.msra.mxu0 0
  %582 = vmatprep.mubr.bf16.mxu0 0
  %583 = vmatmul.mubr.bf16.gmra.mrb[0].mxu0 %v477
  %v584 = vpop.f32.mrb[0].mxu0
  %v585 = vadd.f32 %v500, %v584
  %v586 = vpop.f32.mrb[0].mxu0
  %v587 = vpop.f32.mrb[0].mxu0
  %v588 = vadd.f32 %v500, %v587
  %v589 = vpop.f32.mrb[0].mxu0
  %590 = vmatprep.mubr.bf16.mxu0 0
  %591 = vmatmul.mubr.bf16.gmra.mrb[0].mxu0 %v478
  %v592 = vpop.f32.mrb[0].mxu0
  %v593 = vadd.f32 %v500, %v592
  %v594 = vpop.f32.mrb[0].mxu0
  %v595 = vpop.f32.mrb[0].mxu0
  %v596 = vadd.f32 %v500, %v595
  %v597 = vpop.f32.mrb[0].mxu0
  %598 = vdwg.mxu0
  %v599 = vld [vmem:[%s2] sm:$0xff]
  %v600 = vld [vmem:[%s2 + $0x8] sm:$0xff]
  %v601 = vld [vmem:[%s2 + $0x10] sm:$0xff]
  %v602 = vld [vmem:[%s2 + $0x18] sm:$0xff]
  %604 = vset.pattern.permute.xlu0 0
  %605 = vperm.xlu0 %604, %v599
  %v606 = vpop.permute.xlu0 %605
  %609 = vset.pattern.permute.xlu0 0
  %610 = vperm.xlu0 %609, %v600
  %v611 = vpop.permute.xlu0 %610
  %614 = vset.pattern.permute.xlu0 0
  %615 = vperm.xlu0 %614, %v601
  %v616 = vpop.permute.xlu0 %615
  %619 = vset.pattern.permute.xlu0 0
  %620 = vperm.xlu0 %619, %v602
  %v621 = vpop.permute.xlu0 %620
  %v623 = vmul.f32 %v606, %v42
  %v624 = vmul.f32 %v611, %v43
  %v625 = vmul.f32 %v616, %v44
  %v626 = vmul.f32 %v621, %v45
  %v627 = vld [vmem:[%s3] sm:$0xff]
  %v628 = vld [vmem:[%s3 + $0x8] sm:$0xff]
  %v629 = vld [vmem:[%s3 + $0x10] sm:$0xff]
  %v630 = vld [vmem:[%s3 + $0x18] sm:$0xff]
  %632 = vset.pattern.permute.xlu0 0
  %633 = vperm.xlu0 %632, %v627
  %v634 = vpop.permute.xlu0 %633
  %637 = vset.pattern.permute.xlu0 0
  %638 = vperm.xlu0 %637, %v628
  %v639 = vpop.permute.xlu0 %638
  %642 = vset.pattern.permute.xlu0 0
  %643 = vperm.xlu0 %642, %v629
  %v644 = vpop.permute.xlu0 %643
  %647 = vset.pattern.permute.xlu0 0
  %648 = vperm.xlu0 %647, %v630
  %v649 = vpop.permute.xlu0 %648
  %v651 = vmul.f32 %v634, %v585
  %v652 = vmul.f32 %v639, %v588
  %v653 = vmul.f32 %v644, %v593
  %v654 = vmul.f32 %v649, %v596
  %v655 = vadd.f32 %v623, %v651
  %v656 = vadd.f32 %v624, %v652
  %v657 = vadd.f32 %v625, %v653
  %v658 = vadd.f32 %v626, %v654
  %659 = vst [vmem:[%s12] sm:$0xff] %v655
  %660 = vst [vmem:[%s12 + $0x8] sm:$0xff] %v656
  %661 = vst [vmem:[%s12 + $0x10] sm:$0xff] %v657
  %662 = vst [vmem:[%s12 + $0x18] sm:$0xff] %v658
  // Predicated region
  $region50: #{edm_dit_precond_forward.1} parent=0 // pred_check
    _
  $region51: #{edm_dit_precond_forward.1} parent=0 // pred_check_branch
    %664 = sbr.rel (0) target = $region53
  $region52: #{edm_dit_precond_forward.1} parent=0 // pred_region
    _
  $region53: #{edm_dit_precond_forward.1} parent=0 // pred_fallthru
    _
  // Predicated region
  $region54: #{edm_dit_precond_forward.1} parent=0 // pred_check
    _
  $region55: #{edm_dit_precond_forward.1} parent=0 // pred_check_branch
    %666 = sbr.rel (0) target = $region57
  $region56: #{edm_dit_precond_forward.1} parent=0 // pred_region
    _
  $region57: #{edm_dit_precond_forward.1} parent=0 // pred_fallthru
    _

</llo_original>
